<compile_context>
chip_gen: v6e
topology: v6e:2x2x1
jax: 0.10.0
libtpu: 0.0.40
codegen_flags: <defaults>
</compile_context>

<pallas_src>
import jax
import jax.numpy as jnp
from jax.experimental import pallas as pl
from jax.experimental.pallas import tpu as pltpu

ALPHA = 0.1
BETA = 0.5

_LANE = 128
_SUBLANE = 8


def _vmem_capacity_bytes():
    """Physical VMEM of the current TPU generation (conservative fallback off-TPU)."""
    try:
        cap = int(getattr(pltpu.get_tpu_info(), "vmem_capacity_bytes", 0))
        if cap > 0:
            return cap
    except Exception:  # not on TPU / older API
        pass
    return 64 * 1024 * 1024  # v7x-sized fallback: safe everywhere


def _per_row_vmem_bytes(c, out_isz, log_isz):
    """VMEM bytes per batch row: double-buffered input blocks (lane-padded when C < 128),
    in-kernel f32 temporaries (x, z, one scratch), the lane-padded (tile, 1) int32 targets
    column, and slack for (tile, 1) f32 reduction temporaries."""
    c_pad = pl.cdiv(c, _LANE) * _LANE
    big_inputs = 2 * c_pad * (out_isz + log_isz)    # 2 pipeline buffers per big input
    f32_temps = 3 * 4 * c_pad                       # x, z, exp/diff scratch (f32)
    targets = 2 * _LANE * 4                         # (tile,1) i32, lane-padded, 2 buffers
    small = 2 * _LANE * 4 + 32                      # (tile,1) f32 temps + row blocks
    return big_inputs + f32_temps + targets + small


def _pick_tile_n(n, c, out_isz, log_isz, budget):
    """Rows per grid step: multi-MiB blocks sized from the per-generation VMEM budget,
    >= 2 grid steps once N is large enough (pipelining + v7x megacore), and a single
    whole-batch tile (no padding, no masking) for small N."""
    per_row = _per_row_vmem_bytes(c, out_isz, log_isz)
    cap = max(budget // per_row, _SUBLANE)
    if n <= min(1024, cap):
        return n                                    # one block covering the whole batch
    # Aim for ~4 MiB of big-input bytes per step (and >= 4 steps for huge N), but keep
    # at least 2 grid steps and never exceed the VMEM-derived row cap.
    target_rows = max((4 * 1024 * 1024) // max(c * (out_isz + log_isz), 1), _LANE)
    tile = max(n // 4, target_rows)
    tile = min(tile, (n + 1) // 2, cap)
    # TODO(synk): for extremely large class counts (C >~ 10k) even 128 rows can overflow
    # v7x's 64 MiB VMEM; that regime needs a second 'arbitrary' grid axis over C with an
    # online-LSE accumulator.
    return max(_LANE, (tile // _LANE) * _LANE)


def _make_kernel(c, tile_n, n_valid, need_mask, alpha, beta):
    inv_c = 1.0 / float(c)

    def kernel(out_ref, tgt_ref, logit_ref, w_ref, loss_ref):
        # out_ref/logit_ref: (T, C) native dtype; tgt_ref: (T, 1) i32;
        # w_ref: (1, T) f32 lane-dense; loss_ref: (1, T) f32 lane-dense.
        x = out_ref[...].astype(jnp.float32)
        z = logit_ref[...].astype(jnp.float32)
        t = tgt_ref[...]                                          # (T, 1)

        # Cross entropy (reduction='none'): lse(x) - x[target], numerically stable.
        m = jnp.max(x, axis=-1, keepdims=True)
        lse = m + jnp.log(jnp.sum(jnp.exp(x - m), axis=-1, keepdims=True))
        cls = jax.lax.broadcasted_iota(jnp.int32, x.shape, 1)
        picked = jnp.sum(jnp.where(cls == t, x, 0.0), axis=-1, keepdims=True)

        # Per-row MSE, mean over the class dim.
        diff = x - z
        mse = jnp.sum(diff * diff, axis=-1, keepdims=True) * inv_c

        loss = beta * (lse - picked) + alpha * mse                # (T, 1)
        row = loss[:, 0][None, :] * w_ref[...]                    # (1, T) lane-dense
        if need_mask:
            # Ragged last tile: lanes whose (unpadded) row index is >= N carry garbage
            # from the clipped boundary DMA -- zero them (they are sliced off anyway).
            col = jax.lax.broadcasted_iota(jnp.int32, row.shape, 1)
            col = col + pl.program_id(0) * tile_n
            row = jnp.where(col < n_valid, row, 0.0)
        loss_ref[...] = row

    return kernel


def custom_loss(outputs, targets, logits, weights, *, alpha=ALPHA, beta=BETA, tile_n=None):
    """outputs: (N, C) float, logits: (N, C) float (dtype may differ), targets: (N,) int,
    weights: (N,) float.  Returns the (N,) float32 per-sample weighted loss."""
    n, c = outputs.shape
    out_isz = jnp.dtype(outputs.dtype).itemsize
    log_isz = jnp.dtype(logits.dtype).itemsize

    vmem_cap = _vmem_capacity_bytes()
    block_budget = (9 * vmem_cap) // 16          # ~72 MiB on 128 MiB parts, ~36 MiB on v7x
    per_row = _per_row_vmem_bytes(c, out_isz, log_isz)

    if tile_n is None:
        tile_n = _pick_tile_n(n, c, out_isz, log_isz, block_budget)
    else:
        tile_n = int(tile_n)
        tile_n = n if tile_n >= n else max(_LANE, (tile_n // _LANE) * _LANE)

    if tile_n >= n:
        tile_n, num_tiles, n_pad = n, 1, n       # whole batch in one block, no padding
    else:
        num_tiles = pl.cdiv(n, tile_n)
        n_pad = num_tiles * tile_n
    pad = n_pad - n

    # Only the tiny per-sample vectors are ever padded; the (N, C) tensors are passed
    # through untouched (no extra HBM read/write pass).
    tgt2d = targets.astype(jnp.int32).reshape(n, 1)
    w2d = weights.astype(jnp.float32).reshape(1, n)
    if pad:
        tgt2d = jnp.pad(tgt2d, ((0, pad), (0, 0)))
        w2d = jnp.pad(w2d, ((0, 0), (0, pad)))

    vmem_limit = max(32 * 1024 * 1024, min((3 * vmem_cap) // 4, vmem_cap - (8 << 20)))
    vmem_limit = max(vmem_limit, min(tile_n * per_row + (4 << 20), vmem_cap - (8 << 20)))

    kernel = _make_kernel(c, tile_n, n, pad > 0, float(alpha), float(beta))
    out = pl.pallas_call(
        kernel,
        out_shape=jax.ShapeDtypeStruct((1, n_pad), jnp.float32),
        grid_spec=pltpu.PrefetchScalarGridSpec(
            num_scalar_prefetch=0,
            grid=(num_tiles,),
            in_specs=[
                pl.BlockSpec((tile_n, c), lambda i: (i, 0)),     # model outputs
                pl.BlockSpec((tile_n, 1), lambda i: (i, 0)),     # class targets
                pl.BlockSpec((tile_n, c), lambda i: (i, 0)),     # teacher logits
                pl.BlockSpec((1, tile_n), lambda i: (0, i)),     # weights (lane-dense row)
            ],
            out_specs=pl.BlockSpec((1, tile_n), lambda i: (0, i)),  # lane-dense loss row
        ),
        compiler_params=pltpu.CompilerParams(
            dimension_semantics=("parallel",),   # rows independent; shards across v7x TCs
            vmem_limit_bytes=int(vmem_limit),
        ),
        cost_estimate=pl.CostEstimate(
            flops=8 * n * c,
            transcendentals=n * c + n,           # exp per element + log per row
            bytes_accessed=n * c * (out_isz + log_isz) + 16 * n,
        ),
    )(outputs, tgt2d, logits, w2d)

    return out[0, :n]


def _reference(outputs, targets, logits, weights):
    outputs = outputs.astype(jnp.float32)
    logits = logits.astype(jnp.float32)
    lse = jax.scipy.special.logsumexp(outputs, axis=1)
    ce = lse - jnp.take_along_axis(outputs, targets[:, None], axis=1)[:, 0]
    mse = jnp.mean((outputs - logits) ** 2, axis=1)
    return (BETA * ce + ALPHA * mse) * weights.astype(jnp.float32)


if __name__ == "__main__":
    key = jax.random.PRNGKey(0)
    k1, k2, k3, k4 = jax.random.split(key, 4)

    # Small shapes consistent with the module (per-sample CE + distillation-style MSE).
    N, C = 8, 32
    outputs = jax.random.normal(k1, (N, C), dtype=jnp.float32)
    logits = jax.random.normal(k2, (N, C), dtype=jnp.float32)
    targets = jax.random.randint(k3, (N,), 0, C, dtype=jnp.int32)
    weights = jax.random.uniform(k4, (N,), dtype=jnp.float32)

    result = jax.block_until_ready(custom_loss(outputs, targets, logits, weights))
    ref = _reference(outputs, targets, logits, weights)
    assert result.shape == (N,)
    assert jnp.allclose(result, ref, rtol=1e-5, atol=1e-5), (result, ref)

    # Multi-tile + ragged-last-tile path (explicit 128-row tiles, batch not tile-aligned,
    # big tensors NOT padded -> last tile masked in-kernel).
    N2 = 300
    o2 = jax.random.normal(k1, (N2, C), dtype=jnp.float32)
    l2 = jax.random.normal(k2, (N2, C), dtype=jnp.float32)
    t2 = jax.random.randint(k3, (N2,), 0, C, dtype=jnp.int32)
    w2 = jax.random.uniform(k4, (N2,), dtype=jnp.float32)
    r2 = jax.block_until_ready(custom_loss(o2, t2, l2, w2, tile_n=128))
    ref2 = _reference(o2, t2, l2, w2)
    assert r2.shape == (N2,)
    assert jnp.allclose(r2, ref2, rtol=1e-5, atol=1e-5), (r2, ref2)

    # Automatic tile selection with a multi-step grid and a ragged last tile.
    N3 = 2000
    o3 = jax.random.normal(k1, (N3, C), dtype=jnp.float32)
    l3 = jax.random.normal(k2, (N3, C), dtype=jnp.float32)
    t3 = jax.random.randint(k3, (N3,), 0, C, dtype=jnp.int32)
    w3 = jax.random.uniform(k4, (N3,), dtype=jnp.float32)
    r3 = jax.block_until_ready(custom_loss(o3, t3, l3, w3))
    ref3 = _reference(o3, t3, l3, w3)
    assert r3.shape == (N3,)
    assert jnp.allclose(r3, ref3, rtol=1e-5, atol=1e-5), (r3, ref3)

    # Mixed dtypes: bf16 student outputs with f32 teacher logits -- each tensor is DMA'd
    # in its native dtype and upcast in-kernel (no wrapper downcast of the teacher).
    o_bf = outputs.astype(jnp.bfloat16)
    r_bf = jax.block_until_ready(custom_loss(o_bf, targets, logits, weights))
    ref_bf = _reference(o_bf.astype(jnp.float32), targets, logits, weights)
    assert jnp.allclose(r_bf, ref_bf, rtol=1e-5, atol=1e-5), (r_bf, ref_bf)

    print("KERNEL_OK")
</pallas_src>

<mosaic_0001>
module attributes {stable_mosaic.version = 11 : i64} {
  func.func @kernel(%arg0: i32, %arg1: memref<8x32xf32, #tpu.memory_space<vmem>>, %arg2: memref<8x1xi32, #tpu.memory_space<vmem>>, %arg3: memref<8x32xf32, #tpu.memory_space<vmem>>, %arg4: memref<1x8xf32, #tpu.memory_space<vmem>>, %arg5: memref<1x8xf32, #tpu.memory_space<vmem>>) attributes {dimension_semantics = [#tpu.dimension_semantics<parallel>], iteration_bounds = array<i64: 1>, scalar_prefetch = 0 : i64, scratch_operands = 0 : i64, tpu.core_type = #tpu.core_type<tc>, window_params = [{transform_indices = @transform_0, window_bounds = array<i64: 8, 32>}, {transform_indices = @transform_1, window_bounds = array<i64: 8, 1>}, {transform_indices = @transform_2, window_bounds = array<i64: 8, 32>}, {transform_indices = @transform_3, window_bounds = array<i64: 1, 8>}, {transform_indices = @transform_4, window_bounds = array<i64: 1, 8>}]} {
    %c0 = arith.constant 0 : index
    %c0_0 = arith.constant 0 : index
    %0 = vector.load %arg1[%c0, %c0_0] : memref<8x32xf32, #tpu.memory_space<vmem>>, vector<8x32xf32>
    %c0_1 = arith.constant 0 : index
    %c0_2 = arith.constant 0 : index
    %1 = vector.load %arg3[%c0_1, %c0_2] : memref<8x32xf32, #tpu.memory_space<vmem>>, vector<8x32xf32>
    %c0_3 = arith.constant 0 : index
    %c0_4 = arith.constant 0 : index
    %2 = vector.load %arg2[%c0_3, %c0_4] : memref<8x1xi32, #tpu.memory_space<vmem>>, vector<8x1xi32>
    %cst = arith.constant dense<0xFF800000> : vector<8xf32>
    %3 = vector.multi_reduction <maximumf>, %0, %cst [1] : vector<8x32xf32> to vector<8xf32>
    %4 = vector.shape_cast %3 : vector<8xf32> to vector<8x1xf32>
    %5 = vector.broadcast %4 : vector<8x1xf32> to vector<8x32xf32>
    %6 = arith.subf %0, %5 : vector<8x32xf32>
    %7 = math.exp %6 : vector<8x32xf32>
    %cst_5 = arith.constant dense<0.000000e+00> : vector<8xf32>
    %8 = vector.multi_reduction <add>, %7, %cst_5 [1] : vector<8x32xf32> to vector<8xf32>
    %9 = vector.shape_cast %8 : vector<8xf32> to vector<8x1xf32>
    %10 = math.log %9 : vector<8x1xf32>
    %11 = arith.addf %4, %10 : vector<8x1xf32>
    %12 = tpu.iota {dimensions = array<i32: 1>} : vector<8x32xi32>
    %13 = vector.broadcast %2 : vector<8x1xi32> to vector<8x32xi32>
    %14 = arith.cmpi eq, %12, %13 : vector<8x32xi32>
    %cst_6 = arith.constant 0.000000e+00 : f32
    %15 = vector.broadcast %cst_6 : f32 to vector<8x32xf32>
    %16 = arith.select %14, %0, %15 : vector<8x32xi1>, vector<8x32xf32>
    %cst_7 = arith.constant dense<0.000000e+00> : vector<8xf32>
    %17 = vector.multi_reduction <add>, %16, %cst_7 [1] : vector<8x32xf32> to vector<8xf32>
    %18 = vector.shape_cast %17 : vector<8xf32> to vector<8x1xf32>
    %19 = arith.subf %0, %1 : vector<8x32xf32>
    %20 = arith.mulf %19, %19 : vector<8x32xf32>
    %cst_8 = arith.constant dense<0.000000e+00> : vector<8xf32>
    %21 = vector.multi_reduction <add>, %20, %cst_8 [1] : vector<8x32xf32> to vector<8xf32>
    %22 = vector.shape_cast %21 : vector<8xf32> to vector<8x1xf32>
    %cst_9 = arith.constant 3.125000e-02 : f32
    %23 = vector.broadcast %cst_9 : f32 to vector<8x1xf32>
    %24 = arith.mulf %22, %23 : vector<8x1xf32>
    %25 = arith.subf %11, %18 : vector<8x1xf32>
    %cst_10 = arith.constant 5.000000e-01 : f32
    %26 = vector.broadcast %cst_10 : f32 to vector<8x1xf32>
    %27 = arith.mulf %26, %25 : vector<8x1xf32>
    %cst_11 = arith.constant 1.000000e-01 : f32
    %28 = vector.broadcast %cst_11 : f32 to vector<8x1xf32>
    %29 = arith.mulf %28, %24 : vector<8x1xf32>
    %30 = arith.addf %27, %29 : vector<8x1xf32>
    %31 = vector.shape_cast %30 : vector<8x1xf32> to vector<8xf32>
    %32 = vector.shape_cast %31 : vector<8xf32> to vector<1x8xf32>
    %c0_12 = arith.constant 0 : index
    %c0_13 = arith.constant 0 : index
    %33 = vector.load %arg4[%c0_12, %c0_13] : memref<1x8xf32, #tpu.memory_space<vmem>>, vector<1x8xf32>
    %34 = arith.mulf %32, %33 : vector<1x8xf32>
    %c0_14 = arith.constant 0 : index
    %c0_15 = arith.constant 0 : index
    %35 = vector.load %arg5[%c0_14, %c0_15] : memref<1x8xf32, #tpu.memory_space<vmem>>, vector<1x8xf32>
    tpu.vector_store %arg5[%c0_14, %c0_15], %34 {strides = array<i32>} : memref<1x8xf32, #tpu.memory_space<vmem>>, vector<1x8xf32>,
    return
  }
  func.func @transform_0(%arg0: i32) -> (i32, i32) {
    %c0_i32 = arith.constant 0 : i32
    %c0_i32_0 = arith.constant 0 : i32
    return %arg0, %c0_i32 : i32, i32
  }
  func.func @transform_1(%arg0: i32) -> (i32, i32) {
    %c0_i32 = arith.constant 0 : i32
    %c0_i32_0 = arith.constant 0 : i32
    return %arg0, %c0_i32 : i32, i32
  }
  func.func @transform_2(%arg0: i32) -> (i32, i32) {
    %c0_i32 = arith.constant 0 : i32
    %c0_i32_0 = arith.constant 0 : i32
    return %arg0, %c0_i32 : i32, i32
  }
  func.func @transform_3(%arg0: i32) -> (i32, i32) {
    %c0_i32 = arith.constant 0 : i32
    %c0_i32_0 = arith.constant 0 : i32
    return %c0_i32, %arg0 : i32, i32
  }
  func.func @transform_4(%arg0: i32) -> (i32, i32) {
    %c0_i32 = arith.constant 0 : i32
    %c0_i32_0 = arith.constant 0 : i32
    return %c0_i32, %arg0 : i32, i32
  }
}

</mosaic_0001>

<llo_original>
// kernel: tpu_custom_call.1
$region0: #{tpu_custom_call.1}
  #allocation0 [shape = 'u32[]', space=smem, size = 0x4, offset = 0x4, fixed_abs, tag = 'smem constant byte address 0x4 - core index']
  #allocation1 [shape = 'u32[144,128]{1,0:T(1,128)}', space=vmem, size = 0x12000, scoped, tag = 'internal scratch']
  %s0 = inlined_call_operand.vmem [shape: f32[8,32], index: 0, kind: input, shape index: {}]
  %s1 = inlined_call_operand.vmem [shape: s32[8,1], index: 1, kind: input, shape index: {}]
  %s2 = inlined_call_operand.hbm [shape: f32[8,32], index: 2, kind: input, shape index: {}]
  %s3 = inlined_call_operand.vmem [shape: f32[1,8], index: 3, kind: input, shape index: {}]
  %s4 = inlined_call_operand.hbm [shape: f32[1,8], index: 4, kind: output, shape index: {}]
  %s5 = sld [smem:[#allocation0]]
  $region30: #{tpu_custom_call.1} parent=0
    _
  %s7 = ssub.s32 1, %s5
  %s8 = scalar_select 0, %s7, %s5
  $region1: #{tpu_custom_call.1} parent=0
    #allocation2 [shape = 'u8[4096]{0}', space=vmem, size = 0x1000, scoped, tag = 'input window, operand 2, single buffered']
    #allocation3 [shape = 's32[1]{0}', space=sflag, size = 0x4, scoped, tag = 'scoped memory for tpu_custom_call.1']
    #allocation4 [shape = 's32[1]{0}', space=sflag, size = 0x4, scoped, tag = 'scoped memory for tpu_custom_call.1']
    #allocation5 [shape = 'u8[512]{0}', space=vmem, size = 0x400, scoped, tag = 'output window, operand 0, single buffered']
    %9 = vsyncpa [#allocation3], 0
    %10 = vsyncpa [#allocation4], 0
    // Predicated region
    $region2: #{tpu_custom_call.1} parent=1 // pred_check
      _
    $region3: #{tpu_custom_call.1} parent=1 // pred_check_branch
      %12 = sbr.rel (0) target = $region5
    $region4: #{tpu_custom_call.1} parent=1 // pred_region
      _
    $region5: #{tpu_custom_call.1} parent=1 // pred_fallthru
      _
    // Predicated region
    $region6: #{tpu_custom_call.1} parent=1 // pred_check
      _
    $region7: #{tpu_custom_call.1} parent=1 // pred_check_branch
      %14 = sbr.rel (0) target = $region9
    $region8: #{tpu_custom_call.1} parent=1 // pred_region
      _
    $region9: #{tpu_custom_call.1} parent=1 // pred_fallthru
      _
    // Predicated region
    $region10: #{tpu_custom_call.1} parent=1 // pred_check
      _
    $region11: #{tpu_custom_call.1} parent=1 // pred_check_branch
      %16 = sbr.rel (0) target = $region13
    $region12: #{tpu_custom_call.1} parent=1 // pred_region
      %s18 = ssub.s32 128, 128
      %19 = vsyncadd [#allocation3], %s18
      %s21 = sshll.u32 [#allocation2], 4
      %s22 = int_to_ptr.vmem [resolvable:$true] %s21
      %24 = dma.hbm_to_vmem [thread:$0]  %s2, 128, %s22, [#allocation3]
    $region13: #{tpu_custom_call.1} parent=1 // pred_fallthru
      _
    // Predicated region
    $region14: #{tpu_custom_call.1} parent=1 // pred_check
      _
    $region15: #{tpu_custom_call.1} parent=1 // pred_check_branch
      %26 = sbr.rel (0) target = $region17
    $region16: #{tpu_custom_call.1} parent=1 // pred_region
      _
    $region17: #{tpu_custom_call.1} parent=1 // pred_fallthru
      _
    // Predicated region
    $region18: #{tpu_custom_call.1} parent=1 // pred_check
      _
    $region19: #{tpu_custom_call.1} parent=1 // pred_check_branch
      %28 = sbr.rel (0) target = $region21
    $region20: #{tpu_custom_call.1} parent=1 // pred_region
      %29 = dma.done [#allocation3], 128
    $region21: #{tpu_custom_call.1} parent=1 // pred_fallthru
      _
    %v30 = vld [vmem:[%s0] sm:$0xff]
    %v31 = vld [vmem:[#allocation2] sm:$0xff]
    %v32 = vld [vmem:[%s1] sm:$0xff]
    %vm33 = vcmask 261120
    %v34 = vsel %vm33, %v30, -inf
    %35 = vmax.xlane.f32.xlu0 %v34
    %v36 = vpop.xlane.xlu0 %35
    %v37 = vsub.f32 %v30, %v36
    %v38 = vmul.f32 %v37, 1.442695
    %v39 = vpow.pop %v38
    %v40 = vsel %vm33, %v39, 0.0
    %41 = vadd.xlane.f32.xlu0 %v40
    %v42 = vpop.xlane.xlu0 %41
    %v43 = vlog2.pop %v42
    %v44 = vmul.f32 %v43, 0.6931472
    %v45 = vadd.f32 %v36, %v44
    %v46 = vlaneseq
    %v47 = vand.u32 %v46, 127
    %48 = vset.pattern.permute.xlu0 0
    %49 = vperm.xlu0 %48, %v32
    %v50 = vpop.permute.xlu0 %49
    %vm51 = vcmp.eq.s32.totalorder %v47, %v50
    %v52 = vsel %vm51, %v30, 0.0
    %v53 = vsel %vm33, %v52, 0.0
    %54 = vadd.xlane.f32.xlu0 %v53
    %v55 = vpop.xlane.xlu0 %54
    %v56 = vsub.f32 %v30, %v31
    %v57 = vmul.f32 %v56, %v56
    %v58 = vsel %vm33, %v57, 0.0
    %59 = vadd.xlane.f32.xlu0 %v58
    %v60 = vpop.xlane.xlu0 %59
    %v61 = vmul.f32 %v60, 0.03125
    %v62 = vsub.f32 %v45, %v55
    %v63 = vmul.f32 %v62, 0.5
    %v64 = vmul.f32 %v61, 0.1
    %v65 = vadd.f32 %v63, %v64
    %v66 = vld [vmem:[%s3] sm:$0x1]
    %v68 = vlaneseq
    %v69 = vshrl.u32 %v68, 7
    %v70 = vsub.s32 0, %v69
    %v71 = vrot.slane %v66, %v70
    %73 = vbcast.lane.b32.xlu0 %v71, 256
    %v74 = vpop.permute.xlu0 %73
    %v76 = vmul.f32 %v65, %v74
    %78 = vset.pattern.permute.xlu0 0
    %79 = vperm.xlu0 %78, %v76
    %v80 = vpop.permute.xlu0 %79
    %v81 = vlaneseq
    %v82 = vshrl.u32 %v81, 7
    %v83 = vsub.s32 %v47, %v82
    %v84 = vrot.slane %v80, %v83
    %vm86 = vcmask 57344
    %87 = vst.msk [vmem:[#allocation5] sm:$0x1] %vm86, %v84
    // Predicated region
    $region22: #{tpu_custom_call.1} parent=1 // pred_check
      _
    $region23: #{tpu_custom_call.1} parent=1 // pred_check_branch
      %89 = sbr.rel (0) target = $region25
    $region24: #{tpu_custom_call.1} parent=1 // pred_region
      %s91 = ssub.s32 16, 16
      %92 = vsyncadd [#allocation4], %s91
      %s94 = sshll.u32 [#allocation5], 4
      %s95 = int_to_ptr.vmem [resolvable:$true] %s94
      %97 = dma.vmem_to_hbm [thread:$0]  %s95, 16, %s4, [#allocation4]
    $region25: #{tpu_custom_call.1} parent=1 // pred_fallthru
      _
    // Predicated region
    $region26: #{tpu_custom_call.1} parent=1 // pred_check
      _
    $region27: #{tpu_custom_call.1} parent=1 // pred_check_branch
      %99 = sbr.rel (0) target = $region29
    $region28: #{tpu_custom_call.1} parent=1 // pred_region
      %100 = dma.done [#allocation4], 16
    $region29: #{tpu_custom_call.1} parent=1 // pred_fallthru
      _
    %101 = vsyncpa [#allocation3], 1
    %102 = vsyncpa [#allocation4], 1

</llo_original>
